<compile_context>
chip_gen: v7x
topology: tpu7x:2x2x1
jax: 0.10.0
libtpu: 0.0.40
codegen_flags: <defaults>
</compile_context>

<pallas_src>
import math

import jax
import jax.numpy as jnp
from jax.experimental import pallas as pl
from jax.experimental.pallas import tpu as pltpu

# Original PyTorch dims.
NIN, NH0, NH1, NH2, NOUT = 2, 11, 33, 105, 1
# Sublane-padded (multiple-of-8) feature dims used inside the kernel.
NH0P, NH1P, NH2P = 16, 40, 112

_LANE = 128


def _round_up(n, m):
    return ((n + m - 1) // m) * m


def _cdiv(a, b):
    return (a + b - 1) // b


def _tpu_caps():
    """Generation-aware tiling caps (VMEM size and TensorCore count differ)."""
    try:
        kind = jax.devices()[0].device_kind.lower()
    except Exception:  # pragma: no cover - defensive
        kind = ""
    if "7" in kind:  # v7x: 64 MiB physical VMEM, 2 TensorCores per chip
        return {"max_tile": 16384, "vmem_limit": 48 << 20, "two_cores": True}
    if "v5" in kind or "v6" in kind or "lite" in kind:  # v5e / v6e: 128 MiB VMEM
        return {"max_tile": 32768, "vmem_limit": 96 << 20, "two_cores": False}
    # Unknown / older generation: stay conservative, keep compiler defaults.
    return {"max_tile": 8192, "vmem_limit": None, "two_cores": False}


def mlp_kernel(x_ref,
               w1_ref, b1_ref,
               w2_ref, b2_ref,
               w3_ref, b3_ref,
               w4t_ref, b4_ref,
               o_ref):
    x = x_ref[...]                                    # (NIN, T) f32, batch on lanes

    # Layer 1: fan_in = 2 -> two VPU broadcast-FMAs (a K=2 MXU matmul is ~2% fill).
    h = (w1_ref[:, 0:1] * x[0:1, :]
         + w1_ref[:, 1:2] * x[1:2, :]
         + b1_ref[...])                               # (NH0P, T)
    h = jnp.maximum(h, 0.0)

    # Layer 2: (40, 16) @ (16, T) on the MXU.
    h = jnp.dot(w2_ref[...], h, preferred_element_type=jnp.float32) + b2_ref[...]
    h = jnp.maximum(h, 0.0)                           # (NH1P, T)

    # Layer 3: (112, 40) @ (40, T) on the MXU.
    h = jnp.dot(w3_ref[...], h, preferred_element_type=jnp.float32) + b3_ref[...]
    h = jnp.maximum(h, 0.0)                           # (NH2P, T)

    # Layer 4: out_features = 1 -> VPU broadcast-multiply + cross-sublane reduce
    # instead of an M=1 (heavily underfilled) MXU matmul; output stays lane-dense.
    out = jnp.sum(w4t_ref[...] * h, axis=0, keepdims=True) + b4_ref[...]  # (1, T)
    o_ref[...] = out.astype(o_ref.dtype)


def prepare_params(params):
    """Zero-pad PyTorch-layout params to sublane multiples and pre-transpose w4.

    Padding is numerically exact: padded output rows have zero weight and zero
    bias (ReLU(0)=0) and padded input columns multiply those zero activations.
    """
    def col(b, n, npad):
        b = jnp.asarray(b, jnp.float32).reshape(n, 1)
        return jnp.pad(b, ((0, npad - n), (0, 0)))

    w1 = jnp.asarray(params["w1"], jnp.float32)       # (11, 2)
    w2 = jnp.asarray(params["w2"], jnp.float32)       # (33, 11)
    w3 = jnp.asarray(params["w3"], jnp.float32)       # (105, 33)
    w4 = jnp.asarray(params["w4"], jnp.float32)       # (1, 105)

    return {
        "w1": jnp.pad(w1, ((0, NH0P - NH0), (0, 0))),               # (16, 2)
        "b1": col(params["b1"], NH0, NH0P),                          # (16, 1)
        "w2": jnp.pad(w2, ((0, NH1P - NH1), (0, NH0P - NH0))),       # (40, 16)
        "b2": col(params["b2"], NH1, NH1P),                          # (40, 1)
        "w3": jnp.pad(w3, ((0, NH2P - NH2), (0, NH1P - NH1))),       # (112, 40)
        "b3": col(params["b3"], NH2, NH2P),                          # (112, 1)
        "w4t": jnp.pad(w4, ((0, 0), (0, NH2P - NH2))).T,             # (112, 1)
        "b4": jnp.asarray(params["b4"], jnp.float32).reshape(NOUT, 1),
    }


def _choose_tiling(B, tile_b, caps):
    tile_cap = _round_up(max(_LANE, min(int(tile_b), caps["max_tile"])), _LANE)
    n = max(1, _cdiv(B, tile_cap))
    if caps["two_cores"] and B >= 2 * _LANE:
        n = max(n, 2)           # both v7x TensorCores get at least one tile
        if n % 2:
            n += 1              # even, balanced number of "parallel" steps
    eff_tile = _round_up(_cdiv(B, n), _LANE)    # bounds padding waste to <128 cols
    return eff_tile, n * eff_tile


def optimal_net_forward(x, prepared, *, tile_b=8192):
    """x: (B, NIN) float32.  prepared: output of prepare_params().
    Returns (B, NOUT) float32."""
    B = x.shape[0]
    caps = _tpu_caps()
    eff_tile, b_pad = _choose_tiling(B, tile_b, caps)
    grid = (b_pad // eff_tile,)

    # Batch-on-lanes layout: (NIN, b_pad).  The transpose/pad producers are
    # allowed to fuse into the pallas_call input (allow_input_fusion below).
    xt = jnp.asarray(x, jnp.float32).T
    if b_pad != B:
        xt = jnp.pad(xt, ((0, 0), (0, b_pad - B)))

    # Tiny weights/biases -> full-array blocks, constant index map (VMEM-resident).
    def full_spec(arr):
        return pl.BlockSpec(arr.shape, lambda i: (0, 0))

    weights = (prepared["w1"], prepared["b1"],
               prepared["w2"], prepared["b2"],
               prepared["w3"], prepared["b3"],
               prepared["w4t"], prepared["b4"])

    flops = 2 * (NIN * NH0P + NH0P * NH1P + NH1P * NH2P + NH2P * NOUT) * b_pad
    weight_bytes = sum(int(w.size) * 4 for w in weights)
    cost = pl.CostEstimate(flops=flops, transcendentals=0,
                           bytes_accessed=4 * (NIN + NOUT) * b_pad + weight_bytes)

    compiler_params = pltpu.CompilerParams(
        dimension_semantics=("parallel",),
        vmem_limit_bytes=caps["vmem_limit"],
        allow_input_fusion=[True] + [False] * len(weights),
    )

    out_t = pl.pallas_call(
        mlp_kernel,
        out_shape=jax.ShapeDtypeStruct((NOUT, b_pad), jnp.float32),
        grid_spec=pltpu.PrefetchScalarGridSpec(
            num_scalar_prefetch=0,
            grid=grid,
            in_specs=[pl.BlockSpec((NIN, eff_tile), lambda i: (0, i))]
                     + [full_spec(w) for w in weights],
            out_specs=pl.BlockSpec((NOUT, eff_tile), lambda i: (0, i)),
        ),
        compiler_params=compiler_params,
        cost_estimate=cost,
    )(xt, *weights)

    # (1, b_pad) -> (B, 1); with NOUT == 1 this transpose is just a reshape.
    return out_t[:, :B].T


def init_params(key):
    """PyTorch nn.Linear default init (U[-1/sqrt(fan_in), 1/sqrt(fan_in)]).
    Weights stored as (out_features, in_features) like PyTorch; biases as (out, 1)."""
    dims = [(NIN, NH0), (NH0, NH1), (NH1, NH2), (NH2, NOUT)]
    params = {}
    keys = jax.random.split(key, 2 * len(dims))
    for li, (fan_in, fan_out) in enumerate(dims, start=1):
        bound = 1.0 / math.sqrt(fan_in)
        kw, kb = keys[2 * (li - 1)], keys[2 * (li - 1) + 1]
        params[f"w{li}"] = jax.random.uniform(
            kw, (fan_out, fan_in), jnp.float32, minval=-bound, maxval=bound)
        params[f"b{li}"] = jax.random.uniform(
            kb, (fan_out, 1), jnp.float32, minval=-bound, maxval=bound)
    return params


def reference_forward(x, params):
    h = jnp.maximum(x @ params["w1"].T + params["b1"].T, 0.0)
    h = jnp.maximum(h @ params["w2"].T + params["b2"].T, 0.0)
    h = jnp.maximum(h @ params["w3"].T + params["b3"].T, 0.0)
    return h @ params["w4"].T + params["b4"].T


if __name__ == "__main__":
    key = jax.random.PRNGKey(0)
    k_params, k_x = jax.random.split(key)

    params = init_params(k_params)
    prepared = prepare_params(params)

    batch = 16                     # small, and deliberately NOT a multiple of the tile
    x = jax.random.normal(k_x, (batch, NIN), jnp.float32)

    out = optimal_net_forward(x, prepared, tile_b=8192)
    out = jax.block_until_ready(out)

    ref = reference_forward(x, params)
    assert out.shape == (batch, NOUT)
    assert jnp.allclose(out, ref, atol=1e-5, rtol=1e-5), "mismatch vs pure-JAX reference"

    print("KERNEL_OK")
</pallas_src>

<mosaic_0001>
module attributes {stable_mosaic.version = 11 : i64} {
  func.func @mlp_kernel(%arg0: i32, %arg1: memref<2x128xf32, #tpu.memory_space<vmem>>, %arg2: memref<16x2xf32, #tpu.memory_space<vmem>>, %arg3: memref<16x1xf32, #tpu.memory_space<vmem>>, %arg4: memref<40x16xf32, #tpu.memory_space<vmem>>, %arg5: memref<40x1xf32, #tpu.memory_space<vmem>>, %arg6: memref<112x40xf32, #tpu.memory_space<vmem>>, %arg7: memref<112x1xf32, #tpu.memory_space<vmem>>, %arg8: memref<112x1xf32, #tpu.memory_space<vmem>>, %arg9: memref<1x1xf32, #tpu.memory_space<vmem>>, %arg10: memref<1x128xf32, #tpu.memory_space<vmem>>) attributes {dimension_semantics = [#tpu.dimension_semantics<parallel>], iteration_bounds = array<i64: 1>, scalar_prefetch = 0 : i64, scratch_operands = 0 : i64, tpu.core_type = #tpu.core_type<tc>, window_params = [{transform_indices = @transform_0, window_bounds = array<i64: 2, 128>}, {pipeline_mode = #tpu.pipeline_mode<synchronous>, transform_indices = @transform_1, window_bounds = array<i64: 16, 2>}, {pipeline_mode = #tpu.pipeline_mode<synchronous>, transform_indices = @transform_2, window_bounds = array<i64: 16, 1>}, {pipeline_mode = #tpu.pipeline_mode<synchronous>, transform_indices = @transform_3, window_bounds = array<i64: 40, 16>}, {pipeline_mode = #tpu.pipeline_mode<synchronous>, transform_indices = @transform_4, window_bounds = array<i64: 40, 1>}, {pipeline_mode = #tpu.pipeline_mode<synchronous>, transform_indices = @transform_5, window_bounds = array<i64: 112, 40>}, {pipeline_mode = #tpu.pipeline_mode<synchronous>, transform_indices = @transform_6, window_bounds = array<i64: 112, 1>}, {pipeline_mode = #tpu.pipeline_mode<synchronous>, transform_indices = @transform_7, window_bounds = array<i64: 112, 1>}, {pipeline_mode = #tpu.pipeline_mode<synchronous>, transform_indices = @transform_8, window_bounds = array<i64: 1, 1>}, {transform_indices = @transform_9, window_bounds = array<i64: 1, 128>}]} {
    %c0 = arith.constant 0 : index
    %c0_0 = arith.constant 0 : index
    %0 = vector.load %arg1[%c0, %c0_0] : memref<2x128xf32, #tpu.memory_space<vmem>>, vector<2x128xf32>
    %c0_1 = arith.constant 0 : index
    %c0_2 = arith.constant 0 : index
    %1 = vector.load %arg2[%c0_1, %c0_2] : memref<16x2xf32, #tpu.memory_space<vmem>>, vector<16x1xf32>
    %2 = vector.extract_strided_slice %0 {offsets = [0, 0], sizes = [1, 128], strides = [1, 1]} : vector<2x128xf32> to vector<1x128xf32>
    %3 = vector.broadcast %1 : vector<16x1xf32> to vector<16x128xf32>
    %4 = vector.broadcast %2 : vector<1x128xf32> to vector<16x128xf32>
    %5 = arith.mulf %3, %4 : vector<16x128xf32>
    %c0_3 = arith.constant 0 : index
    %c1 = arith.constant 1 : index
    %6 = vector.load %arg2[%c0_3, %c1] : memref<16x2xf32, #tpu.memory_space<vmem>>, vector<16x1xf32>
    %7 = vector.extract_strided_slice %0 {offsets = [1, 0], sizes = [1, 128], strides = [1, 1]} : vector<2x128xf32> to vector<1x128xf32>
    %8 = vector.broadcast %6 : vector<16x1xf32> to vector<16x128xf32>
    %9 = vector.broadcast %7 : vector<1x128xf32> to vector<16x128xf32>
    %10 = arith.mulf %8, %9 : vector<16x128xf32>
    %11 = arith.addf %5, %10 : vector<16x128xf32>
    %c0_4 = arith.constant 0 : index
    %c0_5 = arith.constant 0 : index
    %12 = vector.load %arg3[%c0_4, %c0_5] : memref<16x1xf32, #tpu.memory_space<vmem>>, vector<16x1xf32>
    %13 = vector.broadcast %12 : vector<16x1xf32> to vector<16x128xf32>
    %14 = arith.addf %11, %13 : vector<16x128xf32>
    %cst = arith.constant 0.000000e+00 : f32
    %15 = vector.broadcast %cst : f32 to vector<16x128xf32>
    %16 = arith.maximumf %14, %15 : vector<16x128xf32>
    %c0_6 = arith.constant 0 : index
    %c0_7 = arith.constant 0 : index
    %17 = vector.load %arg4[%c0_6, %c0_7] : memref<40x16xf32, #tpu.memory_space<vmem>>, vector<40x16xf32>
    %cst_8 = arith.constant dense<0.000000e+00> : vector<40x128xf32>
    %18 = tpu.matmul %17, %16, %cst_8 {dimension_numbers = #tpu.dot_dimension_numbers<[1], [0], [0], [1], [0, 0, 1, 1], [], []>} : vector<40x16xf32>, vector<16x128xf32>, vector<40x128xf32> -> vector<40x128xf32>
    %c0_9 = arith.constant 0 : index
    %c0_10 = arith.constant 0 : index
    %19 = vector.load %arg5[%c0_9, %c0_10] : memref<40x1xf32, #tpu.memory_space<vmem>>, vector<40x1xf32>
    %20 = vector.broadcast %19 : vector<40x1xf32> to vector<40x128xf32>
    %21 = arith.addf %18, %20 : vector<40x128xf32>
    %cst_11 = arith.constant 0.000000e+00 : f32
    %22 = vector.broadcast %cst_11 : f32 to vector<40x128xf32>
    %23 = arith.maximumf %21, %22 : vector<40x128xf32>
    %c0_12 = arith.constant 0 : index
    %c0_13 = arith.constant 0 : index
    %24 = vector.load %arg6[%c0_12, %c0_13] : memref<112x40xf32, #tpu.memory_space<vmem>>, vector<112x40xf32>
    %cst_14 = arith.constant dense<0.000000e+00> : vector<112x128xf32>
    %25 = tpu.matmul %24, %23, %cst_14 {dimension_numbers = #tpu.dot_dimension_numbers<[1], [0], [0], [1], [0, 0, 1, 1], [], []>} : vector<112x40xf32>, vector<40x128xf32>, vector<112x128xf32> -> vector<112x128xf32>
    %c0_15 = arith.constant 0 : index
    %c0_16 = arith.constant 0 : index
    %26 = vector.load %arg7[%c0_15, %c0_16] : memref<112x1xf32, #tpu.memory_space<vmem>>, vector<112x1xf32>
    %27 = vector.broadcast %26 : vector<112x1xf32> to vector<112x128xf32>
    %28 = arith.addf %25, %27 : vector<112x128xf32>
    %cst_17 = arith.constant 0.000000e+00 : f32
    %29 = vector.broadcast %cst_17 : f32 to vector<112x128xf32>
    %30 = arith.maximumf %28, %29 : vector<112x128xf32>
    %c0_18 = arith.constant 0 : index
    %c0_19 = arith.constant 0 : index
    %31 = vector.load %arg8[%c0_18, %c0_19] : memref<112x1xf32, #tpu.memory_space<vmem>>, vector<112x1xf32>
    %32 = vector.broadcast %31 : vector<112x1xf32> to vector<112x128xf32>
    %33 = arith.mulf %32, %30 : vector<112x128xf32>
    %cst_20 = arith.constant dense<0.000000e+00> : vector<128xf32>
    %34 = vector.multi_reduction <add>, %33, %cst_20 [0] : vector<112x128xf32> to vector<128xf32>
    %35 = vector.shape_cast %34 : vector<128xf32> to vector<1x128xf32>
    %c0_21 = arith.constant 0 : index
    %c0_22 = arith.constant 0 : index
    %36 = vector.load %arg9[%c0_21, %c0_22] : memref<1x1xf32, #tpu.memory_space<vmem>>, vector<1x1xf32>
    %37 = vector.broadcast %36 : vector<1x1xf32> to vector<1x128xf32>
    %38 = arith.addf %35, %37 : vector<1x128xf32>
    %c0_23 = arith.constant 0 : index
    %c0_24 = arith.constant 0 : index
    %39 = vector.load %arg10[%c0_23, %c0_24] : memref<1x128xf32, #tpu.memory_space<vmem>>, vector<1x128xf32>
    tpu.vector_store %arg10[%c0_23, %c0_24], %38 {strides = array<i32>} : memref<1x128xf32, #tpu.memory_space<vmem>>, vector<1x128xf32>,
    return
  }
  func.func @transform_0(%arg0: i32) -> (i32, i32) {
    %c0_i32 = arith.constant 0 : i32
    %c0_i32_0 = arith.constant 0 : i32
    return %c0_i32, %arg0 : i32, i32
  }
  func.func @transform_1(%arg0: i32) -> (i32, i32) {
    %c0_i32 = arith.constant 0 : i32
    %c0_i32_0 = arith.constant 0 : i32
    %c0_i32_1 = arith.constant 0 : i32
    return %c0_i32, %c0_i32_0 : i32, i32
  }
  func.func @transform_2(%arg0: i32) -> (i32, i32) {
    %c0_i32 = arith.constant 0 : i32
    %c0_i32_0 = arith.constant 0 : i32
    %c0_i32_1 = arith.constant 0 : i32
    return %c0_i32, %c0_i32_0 : i32, i32
  }
  func.func @transform_3(%arg0: i32) -> (i32, i32) {
    %c0_i32 = arith.constant 0 : i32
    %c0_i32_0 = arith.constant 0 : i32
    %c0_i32_1 = arith.constant 0 : i32
    return %c0_i32, %c0_i32_0 : i32, i32
  }
  func.func @transform_4(%arg0: i32) -> (i32, i32) {
    %c0_i32 = arith.constant 0 : i32
    %c0_i32_0 = arith.constant 0 : i32
    %c0_i32_1 = arith.constant 0 : i32
    return %c0_i32, %c0_i32_0 : i32, i32
  }
  func.func @transform_5(%arg0: i32) -> (i32, i32) {
    %c0_i32 = arith.constant 0 : i32
    %c0_i32_0 = arith.constant 0 : i32
    %c0_i32_1 = arith.constant 0 : i32
    return %c0_i32, %c0_i32_0 : i32, i32
  }
  func.func @transform_6(%arg0: i32) -> (i32, i32) {
    %c0_i32 = arith.constant 0 : i32
    %c0_i32_0 = arith.constant 0 : i32
    %c0_i32_1 = arith.constant 0 : i32
    return %c0_i32, %c0_i32_0 : i32, i32
  }
  func.func @transform_7(%arg0: i32) -> (i32, i32) {
    %c0_i32 = arith.constant 0 : i32
    %c0_i32_0 = arith.constant 0 : i32
    %c0_i32_1 = arith.constant 0 : i32
    return %c0_i32, %c0_i32_0 : i32, i32
  }
  func.func @transform_8(%arg0: i32) -> (i32, i32) {
    %c0_i32 = arith.constant 0 : i32
    %c0_i32_0 = arith.constant 0 : i32
    %c0_i32_1 = arith.constant 0 : i32
    return %c0_i32, %c0_i32_0 : i32, i32
  }
  func.func @transform_9(%arg0: i32) -> (i32, i32) {
    %c0_i32 = arith.constant 0 : i32
    %c0_i32_0 = arith.constant 0 : i32
    return %c0_i32, %arg0 : i32, i32
  }
}

</mosaic_0001>

<llo_original>
// kernel: tpu_custom_call.1
$region0: #{tpu_custom_call.1}
  #allocation0 [shape = 'u32[]', space=smem, size = 0x4, offset = 0x4, fixed_abs, tag = 'smem constant byte address 0x4 - core index']
  #allocation1 [shape = 'u32[144,128]{1,0:T(1,128)}', space=vmem, size = 0x12000, scoped, tag = 'internal scratch']
  #allocation2 [shape = 'f32[1,1]{1,0:T(1,128)S(1)}', space=vmem, size = 0x200, scoped, tag = 'scoped memory for tpu_custom_call.1']
  %s0 = inlined_call_operand.vmem [shape: f32[2,128], index: 0, kind: input, shape index: {}]
  %s1 = inlined_call_operand.vmem [shape: f32[16,2], index: 1, kind: input, shape index: {}]
  %s2 = inlined_call_operand.vmem [shape: f32[16,1], index: 2, kind: input, shape index: {}]
  %s3 = inlined_call_operand.vmem [shape: f32[40,16], index: 3, kind: input, shape index: {}]
  %s4 = inlined_call_operand.vmem [shape: f32[40,1], index: 4, kind: input, shape index: {}]
  %s5 = inlined_call_operand.vmem [shape: f32[112,40], index: 5, kind: input, shape index: {}]
  %s6 = inlined_call_operand.vmem [shape: f32[112,1], index: 6, kind: input, shape index: {}]
  %s7 = inlined_call_operand.vmem [shape: f32[112,1], index: 7, kind: input, shape index: {}]
  %s8 = inlined_call_operand.<no memory space> [shape: f32[1,1], index: 8, kind: input, shape index: {}]
  %s9 = inlined_call_operand.hbm [shape: f32[1,128], index: 9, kind: output, shape index: {}]
  %s10 = sld [smem:[#allocation0]]
  $region46: #{tpu_custom_call.1} parent=0
    _
  %s12 = ssub.s32 1, %s10
  %s13 = scalar_select 0, %s12, %s10
  %v14 = vstv %s8
  %15 = vst [vmem:[#allocation2] sm:$0x1] %v14
  $region1: #{tpu_custom_call.1} parent=0
    #allocation3 [shape = 'u8[512]{0}', space=vmem, size = 0x400, scoped, tag = 'output window, operand 0, single buffered']
    #allocation4 [shape = 's32[1]{0}', space=sflag, size = 0x4, scoped, tag = 'scoped memory for tpu_custom_call.1']
    %16 = vsyncpa [#allocation4], 0
    // Predicated region
    $region2: #{tpu_custom_call.1} parent=1 // pred_check
      _
    $region3: #{tpu_custom_call.1} parent=1 // pred_check_branch
      %18 = sbr.rel (0) target = $region5
    $region4: #{tpu_custom_call.1} parent=1 // pred_region
      _
    $region5: #{tpu_custom_call.1} parent=1 // pred_fallthru
      _
    // Predicated region
    $region6: #{tpu_custom_call.1} parent=1 // pred_check
      _
    $region7: #{tpu_custom_call.1} parent=1 // pred_check_branch
      %20 = sbr.rel (0) target = $region9
    $region8: #{tpu_custom_call.1} parent=1 // pred_region
      _
    $region9: #{tpu_custom_call.1} parent=1 // pred_fallthru
      _
    // Predicated region
    $region10: #{tpu_custom_call.1} parent=1 // pred_check
      _
    $region11: #{tpu_custom_call.1} parent=1 // pred_check_branch
      %22 = sbr.rel (0) target = $region13
    $region12: #{tpu_custom_call.1} parent=1 // pred_region
      _
    $region13: #{tpu_custom_call.1} parent=1 // pred_fallthru
      _
    // Predicated region
    $region14: #{tpu_custom_call.1} parent=1 // pred_check
      _
    $region15: #{tpu_custom_call.1} parent=1 // pred_check_branch
      %24 = sbr.rel (0) target = $region17
    $region16: #{tpu_custom_call.1} parent=1 // pred_region
      _
    $region17: #{tpu_custom_call.1} parent=1 // pred_fallthru
      _
    // Predicated region
    $region18: #{tpu_custom_call.1} parent=1 // pred_check
      _
    $region19: #{tpu_custom_call.1} parent=1 // pred_check_branch
      %26 = sbr.rel (0) target = $region21
    $region20: #{tpu_custom_call.1} parent=1 // pred_region
      _
    $region21: #{tpu_custom_call.1} parent=1 // pred_fallthru
      _
    // Predicated region
    $region22: #{tpu_custom_call.1} parent=1 // pred_check
      _
    $region23: #{tpu_custom_call.1} parent=1 // pred_check_branch
      %28 = sbr.rel (0) target = $region25
    $region24: #{tpu_custom_call.1} parent=1 // pred_region
      _
    $region25: #{tpu_custom_call.1} parent=1 // pred_fallthru
      _
    // Predicated region
    $region26: #{tpu_custom_call.1} parent=1 // pred_check
      _
    $region27: #{tpu_custom_call.1} parent=1 // pred_check_branch
      %30 = sbr.rel (0) target = $region29
    $region28: #{tpu_custom_call.1} parent=1 // pred_region
      _
    $region29: #{tpu_custom_call.1} parent=1 // pred_fallthru
      _
    // Predicated region
    $region30: #{tpu_custom_call.1} parent=1 // pred_check
      _
    $region31: #{tpu_custom_call.1} parent=1 // pred_check_branch
      %32 = sbr.rel (0) target = $region33
    $region32: #{tpu_custom_call.1} parent=1 // pred_region
      _
    $region33: #{tpu_custom_call.1} parent=1 // pred_fallthru
      _
    // Predicated region
    $region34: #{tpu_custom_call.1} parent=1 // pred_check
      _
    $region35: #{tpu_custom_call.1} parent=1 // pred_check_branch
      %34 = sbr.rel (0) target = $region37
    $region36: #{tpu_custom_call.1} parent=1 // pred_region
      _
    $region37: #{tpu_custom_call.1} parent=1 // pred_fallthru
      _
    %v35 = vld [vmem:[%s0] sm:$0x3]
    %v36 = vld [vmem:[%s1] sm:$0xff]
    %v37 = vld [vmem:[%s1 + $0x8] sm:$0xff]
    %39 = vset.pattern.permute.xlu0 0
    %40 = vperm.xlu0 %39, %v36
    %v41 = vpop.permute.xlu0 %40
    %44 = vset.pattern.permute.xlu0 0
    %45 = vperm.xlu0 %44, %v37
    %v46 = vpop.permute.xlu0 %45
    %v48 = vlaneseq
    %v49 = vshrl.u32 %v48, 7
    %v50 = vsub.s32 0, %v49
    %v51 = vrot.slane %v35, %v50
    %v52 = vmul.f32 %v41, %v51
    %v53 = vmul.f32 %v46, %v51
    %54 = vset.pattern.permute.xlu0 1
    %55 = vperm.xlu0 %54, %v36
    %v56 = vpop.permute.xlu0 %55
    %58 = vset.pattern.permute.xlu0 1
    %59 = vperm.xlu0 %58, %v37
    %v60 = vpop.permute.xlu0 %59
    %v62 = vlaneseq
    %v63 = vshrl.u32 %v62, 7
    %v64 = vsub.s32 1, %v63
    %v65 = vrot.slane %v35, %v64
    %v66 = vmul.f32 %v56, %v65
    %v67 = vmul.f32 %v60, %v65
    %v68 = vadd.f32 %v52, %v66
    %v69 = vadd.f32 %v53, %v67
    %v70 = vld [vmem:[%s2] sm:$0xff]
    %v71 = vld [vmem:[%s2 + $0x8] sm:$0xff]
    %73 = vset.pattern.permute.xlu0 0
    %74 = vperm.xlu0 %73, %v70
    %v75 = vpop.permute.xlu0 %74
    %78 = vset.pattern.permute.xlu0 0
    %79 = vperm.xlu0 %78, %v71
    %v80 = vpop.permute.xlu0 %79
    %v82 = vadd.f32 %v68, %v75
    %v83 = vadd.f32 %v69, %v80
    %v84 = vmax.f32 %v82, 0.0
    %v85 = vmax.f32 %v83, 0.0
    %v86 = vld [vmem:[%s3] sm:$0xff]
    %v87 = vld [vmem:[%s3 + $0x8] sm:$0xff]
    %v88 = vld [vmem:[%s3 + $0x10] sm:$0xff]
    %v89 = vld [vmem:[%s3 + $0x18] sm:$0xff]
    %v90 = vld [vmem:[%s3 + $0x20] sm:$0xff]
    %v91 = vld [vmem:[%s4] sm:$0xff]
    %v92 = vld [vmem:[%s4 + $0x8] sm:$0xff]
    %v93 = vld [vmem:[%s4 + $0x10] sm:$0xff]
    %v94 = vld [vmem:[%s4 + $0x18] sm:$0xff]
    %v95 = vld [vmem:[%s4 + $0x20] sm:$0xff]
    %97 = vset.pattern.permute.xlu0 0
    %98 = vperm.xlu0 %97, %v91
    %v99 = vpop.permute.xlu0 %98
    %102 = vset.pattern.permute.xlu0 0
    %103 = vperm.xlu0 %102, %v92
    %v104 = vpop.permute.xlu0 %103
    %107 = vset.pattern.permute.xlu0 0
    %108 = vperm.xlu0 %107, %v93
    %v109 = vpop.permute.xlu0 %108
    %112 = vset.pattern.permute.xlu0 0
    %113 = vperm.xlu0 %112, %v94
    %v114 = vpop.permute.xlu0 %113
    %117 = vset.pattern.permute.xlu0 0
    %118 = vperm.xlu0 %117, %v95
    %v119 = vpop.permute.xlu0 %118
    %vm121 = vcmask 130048
    %v123 = vsel %vm121, %v86, 0
    %v126 = vsel %vm121, %v87, 0
    %v129 = vsel %vm121, %v88, 0
    %v132 = vsel %vm121, %v89, 0
    %v135 = vsel %vm121, %v90, 0
    %137 = vmatprep.subr.mxu0 0.0
    %138 = vmatpush1.msra.mxu0 %v84
    %139 = vmatprep.subr.mxu0 0.0
    %140 = vmatpush1.msra.mxu0 %v85
    %141 = vmatprep.subr.mxu0 0.0
    %142 = vmatpush1.msra.mxu0 0.0
    %143 = vmatprep.subr.mxu0 0.0
    %144 = vmatpush1.msra.mxu0 0.0
    %145 = vmatprep.subr.mxu0 0.0
    %146 = vmatpush1.msra.mxu0 0.0
    %147 = vmatprep.subr.mxu0 0.0
    %148 = vmatpush1.msra.mxu0 0.0
    %149 = vmatprep.subr.mxu0 0.0
    %150 = vmatpush1.msra.mxu0 0.0
    %151 = vmatprep.subr.mxu0 0.0
    %152 = vmatpush1.msra.mxu0 0.0
    %153 = vmatprep.subr.mxu0 0.0
    %154 = vmatpush1.msra.mxu0 0.0
    %155 = vmatprep.subr.mxu0 0.0
    %156 = vmatpush1.msra.mxu0 0.0
    %157 = vmatprep.subr.mxu0 0.0
    %158 = vmatpush1.msra.mxu0 0.0
    %159 = vmatprep.subr.mxu0 0.0
    %160 = vmatpush1.msra.mxu0 0.0
    %161 = vmatprep.subr.mxu0 0.0
    %162 = vmatpush1.msra.mxu0 0.0
    %163 = vmatprep.subr.mxu0 0.0
    %164 = vmatpush1.msra.mxu0 0.0
    %165 = vmatprep.subr.mxu0 0.0
    %166 = vmatpush1.msra.mxu0 0.0
    %167 = vmatprep.subr.mxu0 0.0
    %168 = vmatpush1.msra.mxu0 0.0
    %169 = vmatprep.subr.mxu0 0.0
    %170 = vmatpush1.msra.mxu0 0.0
    %171 = vmatprep.subr.mxu0 0.0
    %172 = vmatpush1.msra.mxu0 0.0
    %173 = vmatprep.subr.mxu0 0.0
    %174 = vmatpush1.msra.mxu0 0.0
    %175 = vmatprep.subr.mxu0 0.0
    %176 = vmatpush1.msra.mxu0 0.0
    %177 = vmatprep.subr.mxu0 0.0
    %178 = vmatpush1.msra.mxu0 0.0
    %179 = vmatprep.subr.mxu0 0.0
    %180 = vmatpush1.msra.mxu0 0.0
    %181 = vmatprep.subr.mxu0 0.0
    %182 = vmatpush1.msra.mxu0 0.0
    %183 = vmatprep.subr.mxu0 0.0
    %184 = vmatpush1.msra.mxu0 0.0
    %185 = vmatprep.subr.mxu0 0.0
    %186 = vmatpush1.msra.mxu0 0.0
    %187 = vmatprep.subr.mxu0 0.0
    %188 = vmatpush1.msra.mxu0 0.0
    %189 = vmatprep.subr.mxu0 0.0
    %190 = vmatpush1.msra.mxu0 0.0
    %191 = vmatprep.subr.mxu0 0.0
    %192 = vmatpush1.msra.mxu0 0.0
    %193 = vmatprep.subr.mxu0 0.0
    %194 = vmatpush1.msra.mxu0 0.0
    %195 = vmatprep.subr.mxu0 0.0
    %196 = vmatpush1.msra.mxu0 0.0
    %197 = vmatprep.subr.mxu0 0.0
    %198 = vmatpush1.msra.mxu0 0.0
    %199 = vmatprep.subr.mxu0 0.0
    %200 = vmatpush1.msra.mxu0 0.0
    %201 = vmatprep.mubr.f32.mxu0 0.0
    %202 = vmatmul.mubr.f32.gmra.mrb[0].mxu0 %v123
    %v203 = vpop.f32.mrb[0].mxu0
    %v204 = vadd.f32 %v99, %v203
    %v205 = vpop.f32.mrb[0].mxu0
    %206 = vmatprep.mubr.f32.mxu0 0.0
    %207 = vmatmul.mubr.f32.gmra.mrb[0].mxu0 %v126
    %v208 = vpop.f32.mrb[0].mxu0
    %v209 = vadd.f32 %v104, %v208
    %v210 = vpop.f32.mrb[0].mxu0
    %211 = vmatprep.mubr.f32.mxu0 0.0
    %212 = vmatmul.mubr.f32.gmra.mrb[0].mxu0 %v129
    %v213 = vpop.f32.mrb[0].mxu0
    %v214 = vadd.f32 %v109, %v213
    %v215 = vpop.f32.mrb[0].mxu0
    %216 = vmatprep.mubr.f32.mxu0 0.0
    %217 = vmatmul.mubr.f32.gmra.mrb[0].mxu0 %v132
    %v218 = vpop.f32.mrb[0].mxu0
    %v219 = vadd.f32 %v114, %v218
    %v220 = vpop.f32.mrb[0].mxu0
    %221 = vmatprep.mubr.f32.mxu0 0.0
    %222 = vmatmul.mubr.f32.gmra.mrb[0].mxu0 %v135
    %v223 = vpop.f32.mrb[0].mxu0
    %v224 = vadd.f32 %v119, %v223
    %v225 = vpop.f32.mrb[0].mxu0
    %226 = vdwg.mxu0
    %v227 = vmax.f32 %v204, 0.0
    %v228 = vmax.f32 %v209, 0.0
    %v229 = vmax.f32 %v214, 0.0
    %v230 = vmax.f32 %v219, 0.0
    %v231 = vmax.f32 %v224, 0.0
    %v232 = vld [vmem:[%s5] sm:$0xff]
    %v233 = vld [vmem:[%s5 + $0x8] sm:$0xff]
    %v234 = vld [vmem:[%s5 + $0x10] sm:$0xff]
    %v235 = vld [vmem:[%s5 + $0x18] sm:$0xff]
    %v236 = vld [vmem:[%s5 + $0x20] sm:$0xff]
    %v237 = vld [vmem:[%s5 + $0x28] sm:$0xff]
    %v238 = vld [vmem:[%s5 + $0x30] sm:$0xff]
    %v239 = vld [vmem:[%s5 + $0x38] sm:$0xff]
    %v240 = vld [vmem:[%s5 + $0x40] sm:$0xff]
    %v241 = vld [vmem:[%s5 + $0x48] sm:$0xff]
    %v242 = vld [vmem:[%s5 + $0x50] sm:$0xff]
    %v243 = vld [vmem:[%s5 + $0x58] sm:$0xff]
    %v244 = vld [vmem:[%s5 + $0x60] sm:$0xff]
    %v245 = vld [vmem:[%s5 + $0x68] sm:$0xff]
    %v246 = vld [vmem:[%s6] sm:$0xff]
    %v247 = vld [vmem:[%s6 + $0x8] sm:$0xff]
    %v248 = vld [vmem:[%s6 + $0x10] sm:$0xff]
    %v249 = vld [vmem:[%s6 + $0x18] sm:$0xff]
    %v250 = vld [vmem:[%s6 + $0x20] sm:$0xff]
    %v251 = vld [vmem:[%s6 + $0x28] sm:$0xff]
    %v252 = vld [vmem:[%s6 + $0x30] sm:$0xff]
    %v253 = vld [vmem:[%s6 + $0x38] sm:$0xff]
    %v254 = vld [vmem:[%s6 + $0x40] sm:$0xff]
    %v255 = vld [vmem:[%s6 + $0x48] sm:$0xff]
    %v256 = vld [vmem:[%s6 + $0x50] sm:$0xff]
    %v257 = vld [vmem:[%s6 + $0x58] sm:$0xff]
    %v258 = vld [vmem:[%s6 + $0x60] sm:$0xff]
    %v259 = vld [vmem:[%s6 + $0x68] sm:$0xff]
    %261 = vset.pattern.permute.xlu0 0
    %262 = vperm.xlu0 %261, %v246
    %v263 = vpop.permute.xlu0 %262
    %266 = vset.pattern.permute.xlu0 0
    %267 = vperm.xlu0 %266, %v247
    %v268 = vpop.permute.xlu0 %267
    %271 = vset.pattern.permute.xlu0 0
    %272 = vperm.xlu0 %271, %v248
    %v273 = vpop.permute.xlu0 %272
    %276 = vset.pattern.permute.xlu0 0
    %277 = vperm.xlu0 %276, %v249
    %v278 = vpop.permute.xlu0 %277
    %281 = vset.pattern.permute.xlu0 0
    %282 = vperm.xlu0 %281, %v250
    %v283 = vpop.permute.xlu0 %282
    %286 = vset.pattern.permute.xlu0 0
    %287 = vperm.xlu0 %286, %v251
    %v288 = vpop.permute.xlu0 %287
    %291 = vset.pattern.permute.xlu0 0
    %292 = vperm.xlu0 %291, %v252
    %v293 = vpop.permute.xlu0 %292
    %296 = vset.pattern.permute.xlu0 0
    %297 = vperm.xlu0 %296, %v253
    %v298 = vpop.permute.xlu0 %297
    %301 = vset.pattern.permute.xlu0 0
    %302 = vperm.xlu0 %301, %v254
    %v303 = vpop.permute.xlu0 %302
    %306 = vset.pattern.permute.xlu0 0
    %307 = vperm.xlu0 %306, %v255
    %v308 = vpop.permute.xlu0 %307
    %311 = vset.pattern.permute.xlu0 0
    %312 = vperm.xlu0 %311, %v256
    %v313 = vpop.permute.xlu0 %312
    %316 = vset.pattern.permute.xlu0 0
    %317 = vperm.xlu0 %316, %v257
    %v318 = vpop.permute.xlu0 %317
    %321 = vset.pattern.permute.xlu0 0
    %322 = vperm.xlu0 %321, %v258
    %v323 = vpop.permute.xlu0 %322
    %326 = vset.pattern.permute.xlu0 0
    %327 = vperm.xlu0 %326, %v259
    %v328 = vpop.permute.xlu0 %327
    %vm330 = vcmask 326656
    %v332 = vsel %vm330, %v232, 0
    %v335 = vsel %vm330, %v233, 0
    %v338 = vsel %vm330, %v234, 0
    %v341 = vsel %vm330, %v235, 0
    %v344 = vsel %vm330, %v236, 0
    %v347 = vsel %vm330, %v237, 0
    %v350 = vsel %vm330, %v238, 0
    %v353 = vsel %vm330, %v239, 0
    %v356 = vsel %vm330, %v240, 0
    %v359 = vsel %vm330, %v241, 0
    %v362 = vsel %vm330, %v242, 0
    %v365 = vsel %vm330, %v243, 0
    %v368 = vsel %vm330, %v244, 0
    %v371 = vsel %vm330, %v245, 0
    %373 = vmatprep.subr.mxu0 0.0
    %374 = vmatpush1.msra.mxu0 %v227
    %375 = vmatprep.subr.mxu0 0.0
    %376 = vmatpush1.msra.mxu0 %v228
    %377 = vmatprep.subr.mxu0 0.0
    %378 = vmatpush1.msra.mxu0 %v229
    %379 = vmatprep.subr.mxu0 0.0
    %380 = vmatpush1.msra.mxu0 %v230
    %381 = vmatprep.subr.mxu0 0.0
    %382 = vmatpush1.msra.mxu0 %v231
    %383 = vmatprep.subr.mxu0 0.0
    %384 = vmatpush1.msra.mxu0 0.0
    %385 = vmatprep.subr.mxu0 0.0
    %386 = vmatpush1.msra.mxu0 0.0
    %387 = vmatprep.subr.mxu0 0.0
    %388 = vmatpush1.msra.mxu0 0.0
    %389 = vmatprep.subr.mxu0 0.0
    %390 = vmatpush1.msra.mxu0 0.0
    %391 = vmatprep.subr.mxu0 0.0
    %392 = vmatpush1.msra.mxu0 0.0
    %393 = vmatprep.subr.mxu0 0.0
    %394 = vmatpush1.msra.mxu0 0.0
    %395 = vmatprep.subr.mxu0 0.0
    %396 = vmatpush1.msra.mxu0 0.0
    %397 = vmatprep.subr.mxu0 0.0
    %398 = vmatpush1.msra.mxu0 0.0
    %399 = vmatprep.subr.mxu0 0.0
    %400 = vmatpush1.msra.mxu0 0.0
    %401 = vmatprep.subr.mxu0 0.0
    %402 = vmatpush1.msra.mxu0 0.0
    %403 = vmatprep.subr.mxu0 0.0
    %404 = vmatpush1.msra.mxu0 0.0
    %405 = vmatprep.subr.mxu0 0.0
    %406 = vmatpush1.msra.mxu0 0.0
    %407 = vmatprep.subr.mxu0 0.0
    %408 = vmatpush1.msra.mxu0 0.0
    %409 = vmatprep.subr.mxu0 0.0
    %410 = vmatpush1.msra.mxu0 0.0
    %411 = vmatprep.subr.mxu0 0.0
    %412 = vmatpush1.msra.mxu0 0.0
    %413 = vmatprep.subr.mxu0 0.0
    %414 = vmatpush1.msra.mxu0 0.0
    %415 = vmatprep.subr.mxu0 0.0
    %416 = vmatpush1.msra.mxu0 0.0
    %417 = vmatprep.subr.mxu0 0.0
    %418 = vmatpush1.msra.mxu0 0.0
    %419 = vmatprep.subr.mxu0 0.0
    %420 = vmatpush1.msra.mxu0 0.0
    %421 = vmatprep.subr.mxu0 0.0
    %422 = vmatpush1.msra.mxu0 0.0
    %423 = vmatprep.subr.mxu0 0.0
    %424 = vmatpush1.msra.mxu0 0.0
    %425 = vmatprep.subr.mxu0 0.0
    %426 = vmatpush1.msra.mxu0 0.0
    %427 = vmatprep.subr.mxu0 0.0
    %428 = vmatpush1.msra.mxu0 0.0
    %429 = vmatprep.subr.mxu0 0.0
    %430 = vmatpush1.msra.mxu0 0.0
    %431 = vmatprep.subr.mxu0 0.0
    %432 = vmatpush1.msra.mxu0 0.0
    %433 = vmatprep.subr.mxu0 0.0
    %434 = vmatpush1.msra.mxu0 0.0
    %435 = vmatprep.subr.mxu0 0.0
    %436 = vmatpush1.msra.mxu0 0.0
    %437 = vmatprep.mubr.f32.mxu0 0.0
    %438 = vmatmul.mubr.f32.gmra.mrb[0].mxu0 %v332
    %v439 = vpop.f32.mrb[0].mxu0
    %v440 = vadd.f32 %v263, %v439
    %v441 = vpop.f32.mrb[0].mxu0
    %442 = vmatprep.mubr.f32.mxu0 0.0
    %443 = vmatmul.mubr.f32.gmra.mrb[0].mxu0 %v335
    %v444 = vpop.f32.mrb[0].mxu0
    %v445 = vadd.f32 %v268, %v444
    %v446 = vpop.f32.mrb[0].mxu0
    %447 = vmatprep.mubr.f32.mxu0 0.0
    %448 = vmatmul.mubr.f32.gmra.mrb[0].mxu0 %v338
    %v449 = vpop.f32.mrb[0].mxu0
    %v450 = vadd.f32 %v273, %v449
    %v451 = vpop.f32.mrb[0].mxu0
    %452 = vmatprep.mubr.f32.mxu0 0.0
    %453 = vmatmul.mubr.f32.gmra.mrb[0].mxu0 %v341
    %v454 = vpop.f32.mrb[0].mxu0
    %v455 = vadd.f32 %v278, %v454
    %v456 = vpop.f32.mrb[0].mxu0
    %457 = vmatprep.mubr.f32.mxu0 0.0
    %458 = vmatmul.mubr.f32.gmra.mrb[0].mxu0 %v344
    %v459 = vpop.f32.mrb[0].mxu0
    %v460 = vadd.f32 %v283, %v459
    %v461 = vpop.f32.mrb[0].mxu0
    %462 = vmatprep.mubr.f32.mxu0 0.0
    %463 = vmatmul.mubr.f32.gmra.mrb[0].mxu0 %v347
    %v464 = vpop.f32.mrb[0].mxu0
    %v465 = vadd.f32 %v288, %v464
    %v466 = vpop.f32.mrb[0].mxu0
    %467 = vmatprep.mubr.f32.mxu0 0.0
    %468 = vmatmul.mubr.f32.gmra.mrb[0].mxu0 %v350
    %v469 = vpop.f32.mrb[0].mxu0
    %v470 = vadd.f32 %v293, %v469
    %v471 = vpop.f32.mrb[0].mxu0
    %472 = vmatprep.mubr.f32.mxu0 0.0
    %473 = vmatmul.mubr.f32.gmra.mrb[0].mxu0 %v353
    %v474 = vpop.f32.mrb[0].mxu0
    %v475 = vadd.f32 %v298, %v474
    %v476 = vpop.f32.mrb[0].mxu0
    %477 = vmatprep.mubr.f32.mxu0 0.0
    %478 = vmatmul.mubr.f32.gmra.mrb[0].mxu0 %v356
    %v479 = vpop.f32.mrb[0].mxu0
    %v480 = vadd.f32 %v303, %v479
    %v481 = vpop.f32.mrb[0].mxu0
    %482 = vmatprep.mubr.f32.mxu0 0.0
    %483 = vmatmul.mubr.f32.gmra.mrb[0].mxu0 %v359
    %v484 = vpop.f32.mrb[0].mxu0
    %v485 = vadd.f32 %v308, %v484
    %v486 = vpop.f32.mrb[0].mxu0
    %487 = vmatprep.mubr.f32.mxu0 0.0
    %488 = vmatmul.mubr.f32.gmra.mrb[0].mxu0 %v362
    %v489 = vpop.f32.mrb[0].mxu0
    %v490 = vadd.f32 %v313, %v489
    %v491 = vpop.f32.mrb[0].mxu0
    %492 = vmatprep.mubr.f32.mxu0 0.0
    %493 = vmatmul.mubr.f32.gmra.mrb[0].mxu0 %v365
    %v494 = vpop.f32.mrb[0].mxu0
    %v495 = vadd.f32 %v318, %v494
    %v496 = vpop.f32.mrb[0].mxu0
    %497 = vmatprep.mubr.f32.mxu0 0.0
    %498 = vmatmul.mubr.f32.gmra.mrb[0].mxu0 %v368
    %v499 = vpop.f32.mrb[0].mxu0
    %v500 = vadd.f32 %v323, %v499
    %v501 = vpop.f32.mrb[0].mxu0
    %502 = vmatprep.mubr.f32.mxu0 0.0
    %503 = vmatmul.mubr.f32.gmra.mrb[0].mxu0 %v371
    %v504 = vpop.f32.mrb[0].mxu0
    %v505 = vadd.f32 %v328, %v504
    %v506 = vpop.f32.mrb[0].mxu0
    %507 = vdwg.mxu0
    %v508 = vmax.f32 %v440, 0.0
    %v509 = vmax.f32 %v445, 0.0
    %v510 = vmax.f32 %v450, 0.0
    %v511 = vmax.f32 %v455, 0.0
    %v512 = vmax.f32 %v460, 0.0
    %v513 = vmax.f32 %v465, 0.0
    %v514 = vmax.f32 %v470, 0.0
    %v515 = vmax.f32 %v475, 0.0
    %v516 = vmax.f32 %v480, 0.0
    %v517 = vmax.f32 %v485, 0.0
    %v518 = vmax.f32 %v490, 0.0
    %v519 = vmax.f32 %v495, 0.0
    %v520 = vmax.f32 %v500, 0.0
    %v521 = vmax.f32 %v505, 0.0
    %v522 = vld [vmem:[%s7] sm:$0xff]
    %v523 = vld [vmem:[%s7 + $0x8] sm:$0xff]
    %v524 = vld [vmem:[%s7 + $0x10] sm:$0xff]
    %v525 = vld [vmem:[%s7 + $0x18] sm:$0xff]
    %v526 = vld [vmem:[%s7 + $0x20] sm:$0xff]
    %v527 = vld [vmem:[%s7 + $0x28] sm:$0xff]
    %v528 = vld [vmem:[%s7 + $0x30] sm:$0xff]
    %v529 = vld [vmem:[%s7 + $0x38] sm:$0xff]
    %v530 = vld [vmem:[%s7 + $0x40] sm:$0xff]
    %v531 = vld [vmem:[%s7 + $0x48] sm:$0xff]
    %v532 = vld [vmem:[%s7 + $0x50] sm:$0xff]
    %v533 = vld [vmem:[%s7 + $0x58] sm:$0xff]
    %v534 = vld [vmem:[%s7 + $0x60] sm:$0xff]
    %v535 = vld [vmem:[%s7 + $0x68] sm:$0xff]
    %537 = vset.pattern.permute.xlu0 0
    %538 = vperm.xlu0 %537, %v522
    %v539 = vpop.permute.xlu0 %538
    %542 = vset.pattern.permute.xlu0 0
    %543 = vperm.xlu0 %542, %v523
    %v544 = vpop.permute.xlu0 %543
    %547 = vset.pattern.permute.xlu0 0
    %548 = vperm.xlu0 %547, %v524
    %v549 = vpop.permute.xlu0 %548
    %552 = vset.pattern.permute.xlu0 0
    %553 = vperm.xlu0 %552, %v525
    %v554 = vpop.permute.xlu0 %553
    %557 = vset.pattern.permute.xlu0 0
    %558 = vperm.xlu0 %557, %v526
    %v559 = vpop.permute.xlu0 %558
    %562 = vset.pattern.permute.xlu0 0
    %563 = vperm.xlu0 %562, %v527
    %v564 = vpop.permute.xlu0 %563
    %567 = vset.pattern.permute.xlu0 0
    %568 = vperm.xlu0 %567, %v528
    %v569 = vpop.permute.xlu0 %568
    %572 = vset.pattern.permute.xlu0 0
    %573 = vperm.xlu0 %572, %v529
    %v574 = vpop.permute.xlu0 %573
    %577 = vset.pattern.permute.xlu0 0
    %578 = vperm.xlu0 %577, %v530
    %v579 = vpop.permute.xlu0 %578
    %582 = vset.pattern.permute.xlu0 0
    %583 = vperm.xlu0 %582, %v531
    %v584 = vpop.permute.xlu0 %583
    %587 = vset.pattern.permute.xlu0 0
    %588 = vperm.xlu0 %587, %v532
    %v589 = vpop.permute.xlu0 %588
    %592 = vset.pattern.permute.xlu0 0
    %593 = vperm.xlu0 %592, %v533
    %v594 = vpop.permute.xlu0 %593
    %597 = vset.pattern.permute.xlu0 0
    %598 = vperm.xlu0 %597, %v534
    %v599 = vpop.permute.xlu0 %598
    %602 = vset.pattern.permute.xlu0 0
    %603 = vperm.xlu0 %602, %v535
    %v604 = vpop.permute.xlu0 %603
    %v606 = vmul.f32 %v539, %v508
    %v607 = vmul.f32 %v544, %v509
    %v608 = vmul.f32 %v549, %v510
    %v609 = vmul.f32 %v554, %v511
    %v610 = vmul.f32 %v559, %v512
    %v611 = vmul.f32 %v564, %v513
    %v612 = vmul.f32 %v569, %v514
    %v613 = vmul.f32 %v574, %v515
    %v614 = vmul.f32 %v579, %v516
    %v615 = vmul.f32 %v584, %v517
    %v616 = vmul.f32 %v589, %v518
    %v617 = vmul.f32 %v594, %v519
    %v618 = vmul.f32 %v599, %v520
    %v619 = vmul.f32 %v604, %v521
    %v620 = vadd.f32 %v606, %v607
    %v621 = vadd.f32 %v620, %v608
    %v622 = vadd.f32 %v621, %v609
    %v623 = vadd.f32 %v622, %v610
    %v624 = vadd.f32 %v623, %v611
    %v625 = vadd.f32 %v624, %v612
    %v626 = vadd.f32 %v625, %v613
    %v627 = vadd.f32 %v626, %v614
    %v628 = vadd.f32 %v627, %v615
    %v629 = vadd.f32 %v628, %v616
    %v630 = vadd.f32 %v629, %v617
    %v631 = vadd.f32 %v630, %v618
    %v632 = vadd.f32 %v631, %v619
    %v633 = vrot.slane %v632, 4
    %v634 = vadd.f32 %v632, %v633
    %v635 = vrot.slane %v634, 2
    %v636 = vadd.f32 %v634, %v635
    %v637 = vrot.slane %v636, 1
    %v638 = vadd.f32 %v636, %v637
    %v639 = vld [vmem:[#allocation2] sm:$0x1]
    %641 = vset.pattern.permute.xlu0 0
    %642 = vperm.xlu0 %641, %v639
    %v643 = vpop.permute.xlu0 %642
    %v645 = vlaneseq
    %v646 = vshrl.u32 %v645, 7
    %v647 = vsub.s32 0, %v646
    %v648 = vrot.slane %v643, %v647
    %v649 = vadd.f32 %v638, %v648
    %650 = vst [vmem:[#allocation3] sm:$0x1] %v649
    // Predicated region
    $region38: #{tpu_custom_call.1} parent=1 // pred_check
      _
    $region39: #{tpu_custom_call.1} parent=1 // pred_check_branch
      %652 = sbr.rel (0) target = $region41
    $region40: #{tpu_custom_call.1} parent=1 // pred_region
      %s654 = ssub.s32 16, 16
      %655 = vsyncadd [#allocation4], %s654
      %s657 = sshll.u32 [#allocation3], 4
      %s658 = int_to_ptr.vmem [resolvable:$true] %s657
      %660 = dma.vmem_to_hbm [thread:$0]  %s658, 16, %s9, [#allocation4]
    $region41: #{tpu_custom_call.1} parent=1 // pred_fallthru
      _
    // Predicated region
    $region42: #{tpu_custom_call.1} parent=1 // pred_check
      _
    $region43: #{tpu_custom_call.1} parent=1 // pred_check_branch
      %662 = sbr.rel (0) target = $region45
    $region44: #{tpu_custom_call.1} parent=1 // pred_region
      %663 = dma.done [#allocation4], 16
    $region45: #{tpu_custom_call.1} parent=1 // pred_fallthru
      _
    %664 = vsyncpa [#allocation4], 1

</llo_original>
